<compile_context>
chip_gen: v7x
topology: tpu7x:2x2x1
jax: 0.10.0
libtpu: 0.0.40
codegen_flags: <defaults>
</compile_context>

<pallas_src>
import functools

import jax
import jax.numpy as jnp
from jax import lax
from jax.experimental import pallas as pl
from jax.experimental.pallas import tpu as pltpu

LANES = 128
ALPHA = 0.7
DEFAULT_BLOCK_ROWS = 2048  # (2048,128) f32 block = 1 MiB; 2 inputs x 2 bufs = ~4 MiB VMEM


def _bce_dice_partials_kernel(p_ref, t_ref, o_ref, *, block_rows, valid_rows, ragged):
    """One grid step: reduce a (block_rows, 128) tile to 4 per-lane partial sums.

    o_ref is the (4, 128) block of this grid step:
      row 0: sum of BCE terms   row 1: sum(p*t)   row 2: sum(p)   row 3: sum(t)
    """
    p = p_ref[...].astype(jnp.float32)
    t = t_ref[...].astype(jnp.float32)

    if ragged:
        # Only the last block can run past the real data; zero those rows.
        # Zeros contribute exactly 0 to every sum (see the -100 clamp below).
        row = (pl.program_id(0) * block_rows
               + lax.broadcasted_iota(jnp.int32, (block_rows, LANES), 0))
        keep = row < valid_rows
        p = jnp.where(keep, p, 0.0)
        t = jnp.where(keep, t, 0.0)

    # nn.BCELoss clamps log at -100 (this also makes p == 0 padding neutral).
    log_p = jnp.maximum(jnp.log(p), -100.0)
    log_1mp = jnp.maximum(jnp.log(1.0 - p), -100.0)
    bce_term = -(t * log_p + (1.0 - t) * log_1mp)

    o_ref[0:1, :] = jnp.sum(bce_term, axis=0, keepdims=True)
    o_ref[1:2, :] = jnp.sum(p * t, axis=0, keepdims=True)
    o_ref[2:3, :] = jnp.sum(p, axis=0, keepdims=True)
    o_ref[3:4, :] = jnp.sum(t, axis=0, keepdims=True)


def bce_dice_loss(input_nchw, target, *, block_rows=DEFAULT_BLOCK_ROWS):
    """input_nchw: (N, 1, H, W) probabilities in (0,1); target: (N, H, W)."""
    pred = input_nchw.reshape(-1)   # native dtype, no wrapper upcast
    truth = target.reshape(-1)
    n = pred.shape[0]
    assert truth.shape[0] == n, "input and target must have the same numel"

    # Lane-pack to (rows, 128). A pad copy only happens when n % 128 != 0;
    # zero padding is mathematically neutral for all four sums.
    rows = -(-n // LANES)
    n128 = rows * LANES
    if n128 != n:
        pred = jnp.pad(pred, (0, n128 - n))
        truth = jnp.pad(truth, (0, n128 - n))
    p2 = pred.reshape(rows, LANES)
    t2 = truth.reshape(rows, LANES)

    br = min(block_rows, rows)
    if br < rows:                       # multi-block: keep sublane-aligned blocks
        br = max(8, (br // 8) * 8)
    num_blocks = -(-rows // br)
    ragged = (rows % br) != 0           # static: only then is the last block masked

    kernel = functools.partial(
        _bce_dice_partials_kernel,
        block_rows=br, valid_rows=rows, ragged=ragged)

    partials = pl.pallas_call(
        kernel,
        out_shape=jax.ShapeDtypeStruct((num_blocks, 4, LANES), jnp.float32),
        grid_spec=pltpu.PrefetchScalarGridSpec(
            num_scalar_prefetch=0,
            grid=(num_blocks,),
            in_specs=[
                pl.BlockSpec((br, LANES), lambda i: (i, 0)),
                pl.BlockSpec((br, LANES), lambda i: (i, 0)),
            ],
            # Leading dim squeezed -> kernel writes a plain (4, 128) block.
            out_specs=pl.BlockSpec((None, 4, LANES), lambda i: (i, 0, 0)),
        ),
        compiler_params=pltpu.CompilerParams(
            dimension_semantics=("parallel",),
        ),
    )(p2, t2)

    # Tiny final reduction (num_blocks x 4 x 128) done by XLA in the wrapper.
    sums = jnp.sum(partials, axis=(0, 2))
    # TODO(synk): PyTorch upcasts these reductions to float64; TPUs have no f64,
    # so accumulation is float32 (per-block/per-lane tree partials for accuracy).
    bce = sums[0] / jnp.float32(n)
    dice = (2.0 * sums[1] + 1.0) / (sums[2] + sums[3] + 1.0)
    return (1.0 - ALPHA) * bce + ALPHA * (1.0 - dice)


def _reference(input_nchw, target):
    """Pure-JAX reference of the PyTorch forward."""
    pred = input_nchw.astype(jnp.float32).reshape(-1)
    truth = target.astype(jnp.float32).reshape(-1)
    log_p = jnp.maximum(jnp.log(pred), -100.0)
    log_1mp = jnp.maximum(jnp.log(1.0 - pred), -100.0)
    bce = jnp.mean(-(truth * log_p + (1.0 - truth) * log_1mp))
    dice = (2.0 * jnp.sum(pred * truth) + 1.0) / (jnp.sum(pred) + jnp.sum(truth) + 1.0)
    return (1.0 - ALPHA) * bce + ALPHA * (1.0 - dice)


if __name__ == "__main__":
    key = jax.random.PRNGKey(0)
    k1, k2 = jax.random.split(key)

    N, C, H, W = 2, 1, 16, 16
    # Predictions are probabilities (as required by BCELoss): squash with sigmoid.
    logits = jax.random.normal(k1, (N, C, H, W), dtype=jnp.float32)
    pred = jax.nn.sigmoid(logits)
    # Binary target mask, shape (N, H, W) (forward does .unsqueeze(1) itself).
    target = (jax.random.uniform(k2, (N, H, W)) > 0.5).astype(jnp.float32)

    loss = bce_dice_loss(pred, target)
    jax.block_until_ready(loss)

    ref = _reference(pred, target)
    assert jnp.allclose(loss, ref, rtol=1e-5, atol=1e-5), (loss, ref)

    print("KERNEL_OK")
</pallas_src>

<mosaic_0001>
module attributes {stable_mosaic.version = 11 : i64} {
  func.func @_bce_dice_partials_kernel(%arg0: i32, %arg1: memref<4x128xf32, #tpu.memory_space<vmem>>, %arg2: memref<4x128xf32, #tpu.memory_space<vmem>>, %arg3: memref<1x4x128xf32, #tpu.memory_space<vmem>>) attributes {dimension_semantics = [#tpu.dimension_semantics<parallel>], iteration_bounds = array<i64: 1>, scalar_prefetch = 0 : i64, scratch_operands = 0 : i64, tpu.core_type = #tpu.core_type<tc>, window_params = [{transform_indices = @transform_0, window_bounds = array<i64: 4, 128>}, {transform_indices = @transform_1, window_bounds = array<i64: 4, 128>}, {transform_indices = @transform_2, window_bounds = array<i64: 1, 4, 128>}]} {
    %c0 = arith.constant 0 : index
    %c0_0 = arith.constant 0 : index
    %0 = vector.load %arg1[%c0, %c0_0] : memref<4x128xf32, #tpu.memory_space<vmem>>, vector<4x128xf32>
    %c0_1 = arith.constant 0 : index
    %c0_2 = arith.constant 0 : index
    %1 = vector.load %arg2[%c0_1, %c0_2] : memref<4x128xf32, #tpu.memory_space<vmem>>, vector<4x128xf32>
    %2 = math.log %0 : vector<4x128xf32>
    %cst = arith.constant -1.000000e+02 : f32
    %3 = vector.broadcast %cst : f32 to vector<4x128xf32>
    %4 = arith.maximumf %2, %3 : vector<4x128xf32>
    %cst_3 = arith.constant 1.000000e+00 : f32
    %5 = vector.broadcast %cst_3 : f32 to vector<4x128xf32>
    %6 = arith.subf %5, %0 : vector<4x128xf32>
    %7 = math.log %6 : vector<4x128xf32>
    %cst_4 = arith.constant -1.000000e+02 : f32
    %8 = vector.broadcast %cst_4 : f32 to vector<4x128xf32>
    %9 = arith.maximumf %7, %8 : vector<4x128xf32>
    %10 = arith.mulf %1, %4 : vector<4x128xf32>
    %cst_5 = arith.constant 1.000000e+00 : f32
    %11 = vector.broadcast %cst_5 : f32 to vector<4x128xf32>
    %12 = arith.subf %11, %1 : vector<4x128xf32>
    %13 = arith.mulf %12, %9 : vector<4x128xf32>
    %14 = arith.addf %10, %13 : vector<4x128xf32>
    %cst_6 = arith.constant 0.000000e+00 : f32
    %15 = vector.broadcast %cst_6 : f32 to vector<4x128xf32>
    %16 = arith.subf %15, %14 : vector<4x128xf32>
    %cst_7 = arith.constant dense<0.000000e+00> : vector<128xf32>
    %17 = vector.multi_reduction <add>, %16, %cst_7 [0] : vector<4x128xf32> to vector<128xf32>
    %18 = vector.shape_cast %17 : vector<128xf32> to vector<1x128xf32>
    %c0_8 = arith.constant 0 : index
    %c0_9 = arith.constant 0 : index
    %c0_10 = arith.constant 0 : index
    %19 = vector.load %arg3[%c0_8, %c0_9, %c0_10] : memref<1x4x128xf32, #tpu.memory_space<vmem>>, vector<1x1x128xf32>
    %20 = vector.shape_cast %19 : vector<1x1x128xf32> to vector<1x128xf32>
    %21 = vector.shape_cast %18 : vector<1x128xf32> to vector<1x1x128xf32>
    tpu.vector_store %arg3[%c0_8, %c0_9, %c0_10], %21 {strides = array<i32>} : memref<1x4x128xf32, #tpu.memory_space<vmem>>, vector<1x1x128xf32>,
    %22 = arith.mulf %0, %1 : vector<4x128xf32>
    %cst_11 = arith.constant dense<0.000000e+00> : vector<128xf32>
    %23 = vector.multi_reduction <add>, %22, %cst_11 [0] : vector<4x128xf32> to vector<128xf32>
    %24 = vector.shape_cast %23 : vector<128xf32> to vector<1x128xf32>
    %c0_12 = arith.constant 0 : index
    %c1 = arith.constant 1 : index
    %c0_13 = arith.constant 0 : index
    %25 = vector.load %arg3[%c0_12, %c1, %c0_13] : memref<1x4x128xf32, #tpu.memory_space<vmem>>, vector<1x1x128xf32>
    %26 = vector.shape_cast %25 : vector<1x1x128xf32> to vector<1x128xf32>
    %27 = vector.shape_cast %24 : vector<1x128xf32> to vector<1x1x128xf32>
    tpu.vector_store %arg3[%c0_12, %c1, %c0_13], %27 {strides = array<i32>} : memref<1x4x128xf32, #tpu.memory_space<vmem>>, vector<1x1x128xf32>,
    %cst_14 = arith.constant dense<0.000000e+00> : vector<128xf32>
    %28 = vector.multi_reduction <add>, %0, %cst_14 [0] : vector<4x128xf32> to vector<128xf32>
    %29 = vector.shape_cast %28 : vector<128xf32> to vector<1x128xf32>
    %c0_15 = arith.constant 0 : index
    %c2 = arith.constant 2 : index
    %c0_16 = arith.constant 0 : index
    %30 = vector.load %arg3[%c0_15, %c2, %c0_16] : memref<1x4x128xf32, #tpu.memory_space<vmem>>, vector<1x1x128xf32>
    %31 = vector.shape_cast %30 : vector<1x1x128xf32> to vector<1x128xf32>
    %32 = vector.shape_cast %29 : vector<1x128xf32> to vector<1x1x128xf32>
    tpu.vector_store %arg3[%c0_15, %c2, %c0_16], %32 {strides = array<i32>} : memref<1x4x128xf32, #tpu.memory_space<vmem>>, vector<1x1x128xf32>,
    %cst_17 = arith.constant dense<0.000000e+00> : vector<128xf32>
    %33 = vector.multi_reduction <add>, %1, %cst_17 [0] : vector<4x128xf32> to vector<128xf32>
    %34 = vector.shape_cast %33 : vector<128xf32> to vector<1x128xf32>
    %c0_18 = arith.constant 0 : index
    %c3 = arith.constant 3 : index
    %c0_19 = arith.constant 0 : index
    %35 = vector.load %arg3[%c0_18, %c3, %c0_19] : memref<1x4x128xf32, #tpu.memory_space<vmem>>, vector<1x1x128xf32>
    %36 = vector.shape_cast %35 : vector<1x1x128xf32> to vector<1x128xf32>
    %37 = vector.shape_cast %34 : vector<1x128xf32> to vector<1x1x128xf32>
    tpu.vector_store %arg3[%c0_18, %c3, %c0_19], %37 {strides = array<i32>} : memref<1x4x128xf32, #tpu.memory_space<vmem>>, vector<1x1x128xf32>,
    return
  }
  func.func @transform_0(%arg0: i32) -> (i32, i32) {
    %c0_i32 = arith.constant 0 : i32
    %c0_i32_0 = arith.constant 0 : i32
    return %arg0, %c0_i32 : i32, i32
  }
  func.func @transform_1(%arg0: i32) -> (i32, i32) {
    %c0_i32 = arith.constant 0 : i32
    %c0_i32_0 = arith.constant 0 : i32
    return %arg0, %c0_i32 : i32, i32
  }
  func.func @transform_2(%arg0: i32) -> (i32, i32, i32) {
    %c0_i32 = arith.constant 0 : i32
    %c0_i32_0 = arith.constant 0 : i32
    %c0_i32_1 = arith.constant 0 : i32
    return %arg0, %c0_i32, %c0_i32_0 : i32, i32, i32
  }
}

</mosaic_0001>

<llo_original>
// kernel: tpu_custom_call.1
$region0: #{tpu_custom_call.1}
  #allocation0 [shape = 'u32[]', space=smem, size = 0x4, offset = 0x4, fixed_abs, tag = 'smem constant byte address 0x4 - core index']
  #allocation1 [shape = 'u32[144,128]{1,0:T(1,128)}', space=vmem, size = 0x12000, scoped, tag = 'internal scratch']
  %s0 = inlined_call_operand.hbm [shape: f32[4,128], index: 0, kind: input, shape index: {}]
  %s1 = inlined_call_operand.hbm [shape: f32[4,128], index: 1, kind: input, shape index: {}]
  %s2 = inlined_call_operand.hbm [shape: f32[1,4,128], index: 2, kind: output, shape index: {}]
  %s3 = sld [smem:[#allocation0]]
  $region26: #{tpu_custom_call.1} parent=0
    _
  %s5 = ssub.s32 1, %s3
  %s6 = scalar_select 0, %s5, %s3
  $region1: #{tpu_custom_call.1} parent=0
    #allocation2 [shape = 'u8[2048]{0}', space=vmem, size = 0x800, scoped, tag = 'input window, operand 0, single buffered']
    #allocation3 [shape = 's32[1]{0}', space=sflag, size = 0x4, scoped, tag = 'scoped memory for tpu_custom_call.1']
    #allocation4 [shape = 's32[1]{0}', space=sflag, size = 0x4, scoped, tag = 'scoped memory for tpu_custom_call.1']
    #allocation5 [shape = 'u8[2048]{0}', space=vmem, size = 0x800, scoped, tag = 'input window, operand 1, single buffered']
    #allocation6 [shape = 's32[1]{0}', space=sflag, size = 0x4, scoped, tag = 'scoped memory for tpu_custom_call.1']
    #allocation7 [shape = 'u8[2048]{0}', space=vmem, size = 0x800, scoped, tag = 'output window, operand 0, single buffered']
    %7 = vsyncpa [#allocation3], 0
    %8 = vsyncpa [#allocation6], 0
    %9 = vsyncpa [#allocation4], 0
    // Predicated region
    $region2: #{tpu_custom_call.1} parent=1 // pred_check
      _
    $region3: #{tpu_custom_call.1} parent=1 // pred_check_branch
      %11 = sbr.rel (0) target = $region5
    $region4: #{tpu_custom_call.1} parent=1 // pred_region
      %s13 = ssub.s32 64, 64
      %14 = vsyncadd [#allocation3], %s13
      %s16 = sshll.u32 [#allocation2], 4
      %s17 = int_to_ptr.vmem [resolvable:$true] %s16
      %19 = dma.hbm_to_vmem [thread:$0]  %s0, 64, %s17, [#allocation3]
    $region5: #{tpu_custom_call.1} parent=1 // pred_fallthru
      _
    // Predicated region
    $region6: #{tpu_custom_call.1} parent=1 // pred_check
      _
    $region7: #{tpu_custom_call.1} parent=1 // pred_check_branch
      %21 = sbr.rel (0) target = $region9
    $region8: #{tpu_custom_call.1} parent=1 // pred_region
      %s23 = ssub.s32 64, 64
      %24 = vsyncadd [#allocation6], %s23
      %s26 = sshll.u32 [#allocation5], 4
      %s27 = int_to_ptr.vmem [resolvable:$true] %s26
      %29 = dma.hbm_to_vmem [thread:$0]  %s1, 64, %s27, [#allocation6]
    $region9: #{tpu_custom_call.1} parent=1 // pred_fallthru
      _
    // Predicated region
    $region10: #{tpu_custom_call.1} parent=1 // pred_check
      _
    $region11: #{tpu_custom_call.1} parent=1 // pred_check_branch
      %31 = sbr.rel (0) target = $region13
    $region12: #{tpu_custom_call.1} parent=1 // pred_region
      %32 = dma.done [#allocation3], 64
    $region13: #{tpu_custom_call.1} parent=1 // pred_fallthru
      _
    // Predicated region
    $region14: #{tpu_custom_call.1} parent=1 // pred_check
      _
    $region15: #{tpu_custom_call.1} parent=1 // pred_check_branch
      %34 = sbr.rel (0) target = $region17
    $region16: #{tpu_custom_call.1} parent=1 // pred_region
      %35 = dma.done [#allocation6], 64
    $region17: #{tpu_custom_call.1} parent=1 // pred_fallthru
      _
    %v36 = vld [vmem:[#allocation2] sm:$0xf]
    %v37 = vld [vmem:[#allocation5] sm:$0xf]
    %v38 = vlog2.pop %v36
    %v39 = vmul.f32 %v38, 0.6931472
    %v40 = vmax.f32 %v39, -100.0
    %v41 = vsub.f32 1.0, %v36
    %v42 = vlog2.pop %v41
    %v43 = vmul.f32 %v42, 0.6931472
    %v44 = vmax.f32 %v43, -100.0
    %v45 = vmul.f32 %v37, %v40
    %v46 = vsub.f32 1.0, %v37
    %v47 = vmul.f32 %v46, %v44
    %v48 = vadd.f32 %v45, %v47
    %v49 = vsub.f32 0.0, %v48
    %vm50 = vcmask 1043456
    %v51 = vsel %vm50, %v49, 0.0
    %v52 = vrot.slane %v51, 4
    %v53 = vadd.f32 %v51, %v52
    %v54 = vrot.slane %v53, 2
    %v55 = vadd.f32 %v53, %v54
    %v56 = vrot.slane %v55, 1
    %v57 = vadd.f32 %v55, %v56
    %58 = vst [vmem:[#allocation7] sm:$0x1] %v57
    %v59 = vmul.f32 %v36, %v37
    %v60 = vsel %vm50, %v59, 0.0
    %v61 = vrot.slane %v60, 4
    %v62 = vadd.f32 %v60, %v61
    %v63 = vrot.slane %v62, 2
    %v64 = vadd.f32 %v62, %v63
    %v65 = vrot.slane %v64, 1
    %v66 = vadd.f32 %v64, %v65
    %67 = vst [vmem:[#allocation7 + $0x1] sm:$0x1] %v66
    %v68 = vsel %vm50, %v36, 0.0
    %v69 = vrot.slane %v68, 4
    %v70 = vadd.f32 %v68, %v69
    %v71 = vrot.slane %v70, 2
    %v72 = vadd.f32 %v70, %v71
    %v73 = vrot.slane %v72, 1
    %v74 = vadd.f32 %v72, %v73
    %75 = vst [vmem:[#allocation7 + $0x2] sm:$0x1] %v74
    %v76 = vsel %vm50, %v37, 0.0
    %v77 = vrot.slane %v76, 4
    %v78 = vadd.f32 %v76, %v77
    %v79 = vrot.slane %v78, 2
    %v80 = vadd.f32 %v78, %v79
    %v81 = vrot.slane %v80, 1
    %v82 = vadd.f32 %v80, %v81
    %83 = vst [vmem:[#allocation7 + $0x3] sm:$0x1] %v82
    // Predicated region
    $region18: #{tpu_custom_call.1} parent=1 // pred_check
      _
    $region19: #{tpu_custom_call.1} parent=1 // pred_check_branch
      %85 = sbr.rel (0) target = $region21
    $region20: #{tpu_custom_call.1} parent=1 // pred_region
      %s87 = ssub.s32 64, 64
      %88 = vsyncadd [#allocation4], %s87
      %s90 = sshll.u32 [#allocation7], 4
      %s91 = int_to_ptr.vmem [resolvable:$true] %s90
      %93 = dma.vmem_to_hbm [thread:$0]  %s91, 64, %s2, [#allocation4]
    $region21: #{tpu_custom_call.1} parent=1 // pred_fallthru
      _
    // Predicated region
    $region22: #{tpu_custom_call.1} parent=1 // pred_check
      _
    $region23: #{tpu_custom_call.1} parent=1 // pred_check_branch
      %95 = sbr.rel (0) target = $region25
    $region24: #{tpu_custom_call.1} parent=1 // pred_region
      %96 = dma.done [#allocation4], 64
    $region25: #{tpu_custom_call.1} parent=1 // pred_fallthru
      _
    %97 = vsyncpa [#allocation3], 1
    %98 = vsyncpa [#allocation6], 1
    %99 = vsyncpa [#allocation4], 1

</llo_original>
